<compile_context>
chip_gen: v7x
topology: tpu7x:2x2x1
jax: 0.10.0
libtpu: 0.0.40
codegen_flags: <defaults>
</compile_context>

<pallas_src>
import jax
import jax.numpy as jnp
from jax.experimental import pallas as pl
from jax.experimental.pallas import tpu as pltpu

# Module-level constants used by the L0 layers code.
LIMIT_A = -0.1
LIMIT_B = 1.1
EPSILON = 1e-6
TEMPERATURE = 2.0 / 3.0

_LANE = 128
_TARGET_BUF_BYTES = 2 * 1024 * 1024  # ~2 MiB per buffer -> ~8 MiB double-buffered


def _scale_kernel(z_ref, x_ref, o_ref):
    # z_ref: (1, C, 1) float32 gate; x_ref / o_ref: (1, C, TILE_HW)
    # gate kept in f32; multiply promotes to f32, cast once on store.
    o_ref[...] = (x_ref[...] * z_ref[...]).astype(o_ref.dtype)


def _gate_eval(qz_loga):
    """Deterministic gate, shape (C,) float32."""
    pi = jax.nn.sigmoid(qz_loga.astype(jnp.float32))
    return jnp.clip(pi * (LIMIT_B - LIMIT_A) + LIMIT_A, 0.0, 1.0)


def _gate_train(qz_loga, eps):
    """Stochastic hard-concrete gate, shape (B, C) float32."""
    qz = qz_loga.astype(jnp.float32)
    eps = eps.astype(jnp.float32)
    logits = (jnp.log(eps) - jnp.log(1.0 - eps) + qz[None, :]) / TEMPERATURE
    z = jax.nn.sigmoid(logits) * (LIMIT_B - LIMIT_A) + LIMIT_A
    return jnp.clip(z, 0.0, 1.0)


def _choose_tile_hw(C, hw_pad, itemsize):
    """Largest multiple of 128 with C*tile*itemsize <= ~2 MiB (but never exceeding hw_pad)."""
    units = max(1, _TARGET_BUF_BYTES // (C * itemsize * _LANE))
    return min(hw_pad, _LANE * units)


def sparse_channel_forward(x, qz_loga, *, training=False, eps=None,
                           tile_hw=None, donate_x=False):
    """x: (B, C, H, W) NCHW; qz_loga: (C,). Returns x * z with per-channel gate z.

    training=True requires eps of shape (B, C) in [EPSILON, 1-EPSILON].
    donate_x=True aliases x's (reshaped) buffer as the output buffer; only use it when
    x is not needed afterwards.
    """
    B, C, H, W = x.shape
    HW = H * W

    # ---- gate: tiny (C) or (B, C) computation, hoisted out of the hot loop ----
    if training:
        if eps is None:
            raise ValueError("training=True requires eps of shape (B, C)")
        z3 = _gate_train(qz_loga, eps).reshape(B, C, 1)          # per-batch gate
    else:
        z3 = _gate_eval(qz_loga).reshape(1, C, 1)                # shared across batch
    zb = z3.shape[0]
    z_index = (lambda b, t: (b, 0, 0)) if zb == B else (lambda b, t: (0, 0, 0))

    # ---- lane-dense layout: flatten spatial dims, pad to a multiple of 128 ----
    x2 = x.reshape(B, C, HW)
    hw_pad = pl.cdiv(HW, _LANE) * _LANE
    if hw_pad != HW:
        x2 = jnp.pad(x2, ((0, 0), (0, 0), (0, hw_pad - HW)))

    itemsize = jnp.dtype(x.dtype).itemsize
    if tile_hw is None:
        tile_hw = _choose_tile_hw(C, hw_pad, itemsize)
    n_t = pl.cdiv(hw_pad, tile_hw)

    x_spec = pl.BlockSpec((1, C, tile_hw), lambda b, t: (b, 0, t))
    z_spec = pl.BlockSpec((1, C, 1), z_index)

    call_kwargs = {}
    if donate_x:
        call_kwargs["input_output_aliases"] = {1: 0}  # operand 1 (x2) -> output 0

    out = pl.pallas_call(
        _scale_kernel,
        out_shape=jax.ShapeDtypeStruct((B, C, hw_pad), x.dtype),
        grid=(B, n_t),
        in_specs=[z_spec, x_spec],
        out_specs=x_spec,
        compiler_params=pltpu.CompilerParams(
            dimension_semantics=("parallel", "parallel")),
        **call_kwargs,
    )(z3, x2)

    if hw_pad != HW:
        out = out[:, :, :HW]
    return out.reshape(B, C, H, W)


# ----------------------------- pure-JAX references ------------------------------

def _reference_eval(x, qz_loga):
    pi = jax.nn.sigmoid(qz_loga.astype(jnp.float32))
    z = jnp.clip(pi * (LIMIT_B - LIMIT_A) + LIMIT_A, 0.0, 1.0)
    return (x.astype(jnp.float32) * z[None, :, None, None]).astype(x.dtype)


def _reference_train(x, qz_loga, eps):
    qz = qz_loga.astype(jnp.float32)
    eps = eps.astype(jnp.float32)
    logits = (jnp.log(eps) - jnp.log(1.0 - eps) + qz[None, :]) / TEMPERATURE
    z = jnp.clip(jax.nn.sigmoid(logits) * (LIMIT_B - LIMIT_A) + LIMIT_A, 0.0, 1.0)
    return (x.astype(jnp.float32) * z[:, :, None, None]).astype(x.dtype)


if __name__ == "__main__":
    key = jax.random.PRNGKey(0)
    kx, kq, ke, kx2 = jax.random.split(key, 4)

    # ---- small NCHW case (HW = 256, already lane-dense) ----
    B, C, H, W = 2, 4, 16, 16
    # deterministic "parameter init": qz_loga ~ Normal(3, 0.01), as in the module __init__
    qz_loga = 3.0 + 0.01 * jax.random.normal(kq, (C,), dtype=jnp.float32)
    x = jax.random.normal(kx, (B, C, H, W), dtype=jnp.float32)

    # eval / deterministic path (module in .eval() mode)
    out_eval = sparse_channel_forward(x, qz_loga, training=False)
    jax.block_until_ready(out_eval)
    assert jnp.allclose(out_eval, _reference_eval(x, qz_loga), atol=1e-5, rtol=1e-5)

    # training path with deterministic uniform eps (replaces torch uniform_ sampling)
    eps = jax.random.uniform(ke, (B, C), minval=EPSILON, maxval=1.0 - EPSILON,
                             dtype=jnp.float32)
    out_train = sparse_channel_forward(x, qz_loga, training=True, eps=eps)
    jax.block_until_ready(out_train)
    assert jnp.allclose(out_train, _reference_train(x, qz_loga, eps), atol=1e-5, rtol=1e-5)

    # ---- HW not a multiple of 128 (7x7 conv map) exercises the padding path ----
    B2, C2, H2, W2 = 2, 8, 7, 7
    qz2 = 3.0 + 0.01 * jax.random.normal(kq, (C2,), dtype=jnp.float32)
    xb = jax.random.normal(kx2, (B2, C2, H2, W2), dtype=jnp.float32)
    out_pad = sparse_channel_forward(xb, qz2, training=False)
    jax.block_until_ready(out_pad)
    assert jnp.allclose(out_pad, _reference_eval(xb, qz2), atol=1e-5, rtol=1e-5)

    # ---- bf16 activations stay bf16 through the kernel (gate held in f32) ----
    x_bf16 = x.astype(jnp.bfloat16)
    out_bf16 = sparse_channel_forward(x_bf16, qz_loga, training=False)
    jax.block_until_ready(out_bf16)
    assert jnp.allclose(out_bf16.astype(jnp.float32),
                        _reference_eval(x_bf16, qz_loga).astype(jnp.float32),
                        atol=2e-2, rtol=2e-2)

    print("KERNEL_OK")
</pallas_src>

<mosaic_0001>
module attributes {stable_mosaic.version = 11 : i64} {
  func.func @_scale_kernel(%arg0: i32, %arg1: i32, %arg2: memref<1x4x1xf32, #tpu.memory_space<vmem>>, %arg3: memref<1x4x256xf32, #tpu.memory_space<vmem>>, %arg4: memref<1x4x256xf32, #tpu.memory_space<vmem>>) attributes {dimension_semantics = [#tpu.dimension_semantics<parallel>, #tpu.dimension_semantics<parallel>], iteration_bounds = array<i64: 2, 1>, scalar_prefetch = 0 : i64, scratch_operands = 0 : i64, tpu.core_type = #tpu.core_type<tc>, window_params = [{pipeline_mode = #tpu.pipeline_mode<synchronous>, transform_indices = @transform_0, window_bounds = array<i64: 1, 4, 1>}, {transform_indices = @transform_1, window_bounds = array<i64: 1, 4, 256>}, {transform_indices = @transform_2, window_bounds = array<i64: 1, 4, 256>}]} {
    %c0 = arith.constant 0 : index
    %c0_0 = arith.constant 0 : index
    %c0_1 = arith.constant 0 : index
    %0 = vector.load %arg3[%c0, %c0_0, %c0_1] : memref<1x4x256xf32, #tpu.memory_space<vmem>>, vector<1x4x256xf32>
    %c0_2 = arith.constant 0 : index
    %c0_3 = arith.constant 0 : index
    %c0_4 = arith.constant 0 : index
    %1 = vector.load %arg2[%c0_2, %c0_3, %c0_4] : memref<1x4x1xf32, #tpu.memory_space<vmem>>, vector<1x4x1xf32>
    %2 = vector.broadcast %1 : vector<1x4x1xf32> to vector<1x4x256xf32>
    %3 = arith.mulf %0, %2 : vector<1x4x256xf32>
    %c0_5 = arith.constant 0 : index
    %c0_6 = arith.constant 0 : index
    %c0_7 = arith.constant 0 : index
    %4 = vector.load %arg4[%c0_5, %c0_6, %c0_7] : memref<1x4x256xf32, #tpu.memory_space<vmem>>, vector<1x4x256xf32>
    tpu.vector_store %arg4[%c0_5, %c0_6, %c0_7], %3 {strides = array<i32>} : memref<1x4x256xf32, #tpu.memory_space<vmem>>, vector<1x4x256xf32>,
    return
  }
  func.func @transform_0(%arg0: i32, %arg1: i32) -> (i32, i32, i32) {
    %c0_i32 = arith.constant 0 : i32
    %c0_i32_0 = arith.constant 0 : i32
    %c0_i32_1 = arith.constant 0 : i32
    %c0_i32_2 = arith.constant 0 : i32
    return %c0_i32, %c0_i32_0, %c0_i32_1 : i32, i32, i32
  }
  func.func @transform_1(%arg0: i32, %arg1: i32) -> (i32, i32, i32) {
    %c0_i32 = arith.constant 0 : i32
    %c0_i32_0 = arith.constant 0 : i32
    return %arg0, %c0_i32, %arg1 : i32, i32, i32
  }
  func.func @transform_2(%arg0: i32, %arg1: i32) -> (i32, i32, i32) {
    %c0_i32 = arith.constant 0 : i32
    %c0_i32_0 = arith.constant 0 : i32
    return %arg0, %c0_i32, %arg1 : i32, i32, i32
  }
}

</mosaic_0001>

<llo_original>
// kernel: tpu_custom_call.1
$region0: #{tpu_custom_call.1}
  #allocation0 [shape = 'u32[]', space=smem, size = 0x4, offset = 0x4, fixed_abs, tag = 'smem constant byte address 0x4 - core index']
  #allocation1 [shape = 'u32[144,128]{1,0:T(1,128)}', space=vmem, size = 0x12000, scoped, tag = 'internal scratch']
  %s0 = inlined_call_operand.vmem [shape: f32[1,4,1], index: 0, kind: input, shape index: {}]
  %s1 = inlined_call_operand.hbm [shape: f32[2,4,256], index: 1, kind: input, shape index: {}]
  %s2 = inlined_call_operand.hbm [shape: f32[2,4,256], index: 2, kind: output, shape index: {}]
  %s3 = sld [smem:[#allocation0]]
  $region45: #{tpu_custom_call.1} parent=0
    _
  %s5 = ssub.s32 1, %s3
  %s6 = scalar_select 0, %s5, %s3
  $region1: #{tpu_custom_call.1} parent=0
    #allocation2 [shape = 'u8[8192]{0}', space=vmem, size = 0x2000, scoped, tag = 'input window, operand 1']
    #allocation3 [shape = 's32[2]{0}', space=sflag, size = 0x8, scoped, tag = 'scoped memory for tpu_custom_call.1']
    #allocation4 [shape = 's32[2]{0}', space=sflag, size = 0x8, scoped, tag = 'scoped memory for tpu_custom_call.1']
    #allocation5 [shape = 'u8[8192]{0}', space=vmem, size = 0x2000, scoped, tag = 'output window, operand 0']
    %7 = vsyncpa [#allocation3], 0
    %s8 = scalar_lea.sflag [#allocation3], 1
    %9 = vsyncpa %s8, 0
    %10 = vsyncpa [#allocation4], 0
    %s11 = scalar_lea.sflag [#allocation4], 1
    %12 = vsyncpa %s11, 0
    loop: start=0, step=1, limit=4
    $region2: #{tpu_custom_call.1} parent=1 // loop_pre_header
      _
    $region3: #{tpu_custom_call.1} parent=1 // loop_header
      %s14 = sphi 0, %s18
      %p15 = scmp.ge.s32.totalorder %s14, 4
      %s21 = sphi 0, %s33
      %s22 = sphi 0, %s29
      %s23 = sphi 0, %s21
      %s24 = sphi 0, %s22
      %s25 = sphi 0, %s23
      %s26 = sphi 0, %s24
      %s34 = sphi 0, %s34
      %s36 = sphi 0, %s34
      %s37 = sphi 0, %s36
      %s51 = sphi 0, %s37
      %s59 = sphi 0, %s61
      %s62 = sphi 0, %s59
      %s63 = sphi 0, %s62
      %s79 = sphi 0, %s63
      %s87 = sphi 0, %s89
      %s90 = sphi 0, %s87
      %s91 = sphi 0, %s90
      %s107 = sphi 0, %s91
    $region4: #{tpu_custom_call.1} parent=1 // loop_header_branch
      %17 = sbr.rel (%p15) target = $region8
    $region5: #{tpu_custom_call.1} parent=1 // loop_body
      %s19 = ssub.s32 %s14, 1
      %s20 = ssub.s32 %s14, 2
      %s27 = sadd.s32 1, %s22
      %p28 = scmp.ge.s32.totalorder %s27, 1
      %s29 = scalar_select %p28, 0, %s27
      %s30 = sadd.s32 1, %s21
      %s31 = scalar_select %p28, %s30, %s21
      %p32 = scmp.ge.s32.totalorder %s31, 2
      %s33 = scalar_select %p32, 0, %s31
      %s35 = sadd.s32 %s34, 1
      %p38 = scmp.eq.s32.totalorder %s14, 1
      %p39 = scmp.ne.s32.totalorder %s34, %s36
      %p40 = scmp.eq.s32.totalorder %s14, 0
      %p41 = por %p39, %p40
      %p42 = scmp.ne.s32.totalorder %s34, %s36
      %p43 = scmp.eq.s32.totalorder %s19, 1
      %p44 = por %p42, %p43
      %p45 = scmp.ne.s32.totalorder %s36, %s37
      %p46 = scmp.eq.s32.totalorder %s19, 0
      %p47 = por %p45, %p46
      %p48 = scmp.ne.s32.totalorder %s36, %s37
      %p49 = scmp.eq.s32.totalorder %s20, 1
      %p50 = por %p48, %p49
      %p52 = scmp.ne.s32.totalorder %s37, %s51
      %p53 = scmp.eq.s32.totalorder %s20, 0
      %p54 = por %p52, %p53
      %s55 = ssub.s32 %s21, %s33
      %s56 = ssub.s32 %s22, %s29
      %s57 = sor.u32 %s55, %s56
      %p58 = scmp.eq.s32.totalorder %s57, 0
      %s60 = sadd.s32 %s59, 1
      %s61 = scalar_select %p58, %s59, %s60
      %p64 = pneg %p58
      %p65 = scmp.eq.s32.totalorder %s14, 1
      %p66 = por %p64, %p65
      %p67 = scmp.ne.s32.totalorder %s59, %s62
      %p68 = scmp.eq.s32.totalorder %s14, 0
      %p69 = por %p67, %p68
      %p70 = scmp.ne.s32.totalorder %s59, %s62
      %p71 = scmp.eq.s32.totalorder %s19, 1
      %p72 = por %p70, %p71
      %p73 = scmp.ne.s32.totalorder %s62, %s63
      %p74 = scmp.eq.s32.totalorder %s19, 0
      %p75 = por %p73, %p74
      %p76 = scmp.ne.s32.totalorder %s62, %s63
      %p77 = scmp.eq.s32.totalorder %s20, 1
      %p78 = por %p76, %p77
      %p80 = scmp.ne.s32.totalorder %s63, %s79
      %p81 = scmp.eq.s32.totalorder %s20, 0
      %p82 = por %p80, %p81
      %s83 = ssub.s32 %s21, %s33
      %s84 = ssub.s32 %s22, %s29
      %s85 = sor.u32 %s83, %s84
      %p86 = scmp.eq.s32.totalorder %s85, 0
      %s88 = sadd.s32 %s87, 1
      %s89 = scalar_select %p86, %s87, %s88
      %p92 = pneg %p86
      %p93 = scmp.eq.s32.totalorder %s14, 1
      %p94 = por %p92, %p93
      %p95 = scmp.ne.s32.totalorder %s87, %s90
      %p96 = scmp.eq.s32.totalorder %s14, 0
      %p97 = por %p95, %p96
      %p98 = scmp.ne.s32.totalorder %s87, %s90
      %p99 = scmp.eq.s32.totalorder %s19, 1
      %p100 = por %p98, %p99
      %p101 = scmp.ne.s32.totalorder %s90, %s91
      %p102 = scmp.eq.s32.totalorder %s19, 0
      %p103 = por %p101, %p102
      %p104 = scmp.ne.s32.totalorder %s90, %s91
      %p105 = scmp.eq.s32.totalorder %s20, 1
      %p106 = por %p104, %p105
      %p108 = scmp.ne.s32.totalorder %s91, %s107
      %p109 = scmp.eq.s32.totalorder %s20, 0
      %p110 = por %p108, %p109
      %p111 = scmp.le.s32.totalorder 1, %s14
      %p112 = scmp.lt.s32.totalorder %s14, 3
      %p113 = pnand %p111, %p112
      %p114 = pneg %p113
      // Predicated region
      $region9: #{tpu_custom_call.1} parent=5 // pred_check
        _
      $region10: #{tpu_custom_call.1} parent=5 // pred_check_branch
        %116 = sbr.rel (%p113) target = $region12
      $region11: #{tpu_custom_call.1} parent=5 // pred_region
        %s117 = ssub.s32 %s14, 1
        // Predicated region
        $region13: #{tpu_custom_call.1} parent=11 // pred_check
          %p118 = pneg %p47
        $region14: #{tpu_custom_call.1} parent=11 // pred_check_branch
          %120 = sbr.rel (%p118) target = $region16
        $region15: #{tpu_custom_call.1} parent=11 // pred_region
          _
        $region16: #{tpu_custom_call.1} parent=11 // pred_fallthru
          _
      $region12: #{tpu_custom_call.1} parent=5 // pred_fallthru
        _
      %p121 = scmp.lt.s32.totalorder %s14, 2
      // Predicated region
      $region17: #{tpu_custom_call.1} parent=5 // pred_check
        %p122 = pneg %p121
      $region18: #{tpu_custom_call.1} parent=5 // pred_check_branch
        %124 = sbr.rel (%p122) target = $region20
      $region19: #{tpu_custom_call.1} parent=5 // pred_region
        // Predicated region
        $region21: #{tpu_custom_call.1} parent=19 // pred_check
          %p125 = pneg %p69
        $region22: #{tpu_custom_call.1} parent=19 // pred_check_branch
          %127 = sbr.rel (%p125) target = $region24
        $region23: #{tpu_custom_call.1} parent=19 // pred_region
          %s128 = sand.u32 %s59, 1
          %s129 = scalar_lea.sflag [#allocation3], %s128
          %s130 = sand.u32 %s59, 1
          %s131 = smul.addr %s130, 8
          %s132 = scalar_lea.vmem [#allocation2], %s131
          %s133 = smul.u32 2, %s22
          %s135 = ssub.s32 128, 128
          %136 = vsyncadd %s129, %s135
          %s137 = smul.addr %s21, 2
          %s138 = sadd.s32 %s133, %s137
          %s139 = smul.addr %s138, 64
          %s140 = scalar_lea.hbm %s1, %s139
          %s142 = sshll.u32 %s132, 4
          %s143 = int_to_ptr.vmem [resolvable:$true] %s142
          %145 = dma.hbm_to_vmem [thread:$0]  %s140, 128, %s143, %s129
        $region24: #{tpu_custom_call.1} parent=19 // pred_fallthru
          _
      $region20: #{tpu_custom_call.1} parent=5 // pred_fallthru
        _
      %p146 = scmp.le.s32.totalorder 1, %s14
      %p147 = scmp.lt.s32.totalorder %s14, 3
      %p148 = pnand %p146, %p147
      %p149 = pneg %p148
      // Predicated region
      $region25: #{tpu_custom_call.1} parent=5 // pred_check
        _
      $region26: #{tpu_custom_call.1} parent=5 // pred_check_branch
        %151 = sbr.rel (%p148) target = $region28
      $region27: #{tpu_custom_call.1} parent=5 // pred_region
        %s152 = ssub.s32 %s14, 1
        %s153 = sand.u32 %s62, 1
        %s154 = scalar_lea.sflag [#allocation3], %s153
        %s155 = sand.u32 %s62, 1
        %s156 = smul.addr %s155, 8
        %s157 = scalar_lea.vmem [#allocation2], %s156
        // Predicated region
        $region29: #{tpu_custom_call.1} parent=27 // pred_check
          %p158 = pneg %p75
        $region30: #{tpu_custom_call.1} parent=27 // pred_check_branch
          %160 = sbr.rel (%p158) target = $region32
        $region31: #{tpu_custom_call.1} parent=27 // pred_region
          %161 = dma.done %s154, 128
        $region32: #{tpu_custom_call.1} parent=27 // pred_fallthru
          _
        %p162 = pneg %p47
        %p163 = pneg %p44
        %s164 = sand.u32 %s62, 1
        %s165 = scalar_lea.sflag [#allocation3], %s164
        %s166 = sand.u32 %s62, 1
        %s167 = smul.addr %s166, 8
        %s168 = scalar_lea.vmem [#allocation2], %s167
        %p169 = pneg %p75
        %p170 = pneg %p72
        %p171 = pneg %p103
        %p172 = pneg %p100
        %s173 = sand.u32 %s90, 1
        %s174 = scalar_lea.sflag [#allocation4], %s173
        %s175 = sand.u32 %s90, 1
        %s176 = smul.addr %s175, 8
        %s177 = scalar_lea.vmem [#allocation5], %s176
        %s178 = smul.u32 2, %s24
        %s179 = smul.u32 2, %s24
        %v180 = vld [vmem:[%s157] sm:$0xff]
        %v181 = vld [vmem:[%s0] sm:$0xf]
        %183 = vset.pattern.permute.xlu0 0
        %184 = vperm.xlu0 %183, %v181
        %v185 = vpop.permute.xlu0 %184
        %v187 = vunpack.c.l.s4 839922192
        %v188 = vunpack.c.0.s8 %v187
        %v189 = vlaneseq
        %v190 = vshrl.u32 %v189, 7
        %v191 = vsub.s32 %v188, %v190
        %v192 = vrot.slane %v185, %v191
        %v194 = vmul.f32 %v180, %v192
        %195 = vst [vmem:[%s177] sm:$0xff] %v194
        %s196 = sand.u32 %s90, 1
        %s197 = scalar_lea.sflag [#allocation4], %s196
        %s198 = sand.u32 %s90, 1
        %s199 = smul.addr %s198, 8
        %s200 = scalar_lea.vmem [#allocation5], %s199
        // Predicated region
        $region33: #{tpu_custom_call.1} parent=27 // pred_check
          %p201 = pneg %p100
        $region34: #{tpu_custom_call.1} parent=27 // pred_check_branch
          %203 = sbr.rel (%p201) target = $region36
        $region35: #{tpu_custom_call.1} parent=27 // pred_region
          %s204 = smul.u32 2, %s24
          %s206 = ssub.s32 128, 128
          %207 = vsyncadd %s197, %s206
          %s208 = smul.addr %s23, 2
          %s209 = sadd.s32 %s204, %s208
          %s210 = smul.addr %s209, 64
          %s211 = scalar_lea.hbm %s2, %s210
          %s213 = sshll.u32 %s200, 4
          %s214 = int_to_ptr.vmem [resolvable:$true] %s213
          %216 = dma.vmem_to_hbm [thread:$0]  %s214, 128, %s211, %s197
        $region36: #{tpu_custom_call.1} parent=27 // pred_fallthru
          _
      $region28: #{tpu_custom_call.1} parent=5 // pred_fallthru
        _
      %p217 = scmp.le.s32.totalorder 2, %s14
      // Predicated region
      $region37: #{tpu_custom_call.1} parent=5 // pred_check
        %p218 = pneg %p217
      $region38: #{tpu_custom_call.1} parent=5 // pred_check_branch
        %220 = sbr.rel (%p218) target = $region40
      $region39: #{tpu_custom_call.1} parent=5 // pred_region
        %s221 = ssub.s32 %s14, 2
        // Predicated region
        $region41: #{tpu_custom_call.1} parent=39 // pred_check
          %p222 = pneg %p106
        $region42: #{tpu_custom_call.1} parent=39 // pred_check_branch
          %224 = sbr.rel (%p222) target = $region44
        $region43: #{tpu_custom_call.1} parent=39 // pred_region
          %s225 = sand.u32 %s91, 1
          %s226 = scalar_lea.sflag [#allocation4], %s225
          %s227 = sand.u32 %s91, 1
          %s228 = smul.addr %s227, 8
          %s229 = scalar_lea.vmem [#allocation5], %s228
          %230 = dma.done %s226, 128
        $region44: #{tpu_custom_call.1} parent=39 // pred_fallthru
          _
      $region40: #{tpu_custom_call.1} parent=5 // pred_fallthru
        _
    $region6: #{tpu_custom_call.1} parent=1 // loop_footer
      %s18 = sadd.s32 1, %s14
    $region7: #{tpu_custom_call.1} parent=1 // loop_footer_branch
      %13 = sbr.rel target = $region3
    $region8: #{tpu_custom_call.1} parent=1 // loop_exit
      _
    %231 = vsyncpa [#allocation3], 1
    %s232 = scalar_lea.sflag [#allocation3], 1
    %233 = vsyncpa %s232, 1
    %234 = vsyncpa [#allocation4], 1
    %s235 = scalar_lea.sflag [#allocation4], 1
    %236 = vsyncpa %s235, 1

</llo_original>
